<compile_context>
chip_gen: v7x
topology: tpu7x:2x2x1
jax: 0.10.0
libtpu: 0.0.40
codegen_flags: <defaults>
</compile_context>

<pallas_src>
import functools

import jax
import jax.numpy as jnp
from jax.experimental import pallas as pl
from jax.experimental.pallas import tpu as pltpu


def _rsoftmax_kernel(x_ref, o_ref, *, radix, cardinality, inner):
    """Softmax over the radix groups of a (TB, C) lane-dense tile.

    Input columns are ordered (cardinality, radix, inner) [torch .view order];
    output columns are ordered (radix, cardinality, inner) [torch output of
    transpose(1,2) + reshape(batch, -1)].
    """
    x = x_ref[...].astype(jnp.float32)  # one cast per tile

    out_pieces = [None] * (radix * cardinality)
    for c in range(cardinality):                      # static, unrolled
        # (TB, inner) contiguous lane slices, one per radix index.
        sl = [x[:, (c * radix + r) * inner:(c * radix + r + 1) * inner]
              for r in range(radix)]
        m = functools.reduce(jnp.maximum, sl)          # elementwise (VPU)
        e = [jnp.exp(s - m) for s in sl]               # EUP
        denom = functools.reduce(lambda a, b: a + b, e)
        # approx=True would be a free EUP op but costs ~2^-12 rel. error;
        # keep exact to preserve 1e-5 parity with the reference.
        inv = pl.reciprocal(denom, approx=False)
        for r in range(radix):
            out_pieces[r * cardinality + c] = e[r] * inv

    out = jnp.concatenate(out_pieces, axis=-1)         # lane-dense (TB, C)
    o_ref[...] = out.astype(o_ref.dtype)


def _sigmoid_kernel(x_ref, o_ref):
    x = x_ref[...].astype(jnp.float32)
    o_ref[...] = jax.nn.sigmoid(x).astype(o_ref.dtype)  # EUP logistic


def _batch_tile(batch, width, dtype_bytes, target_bytes=2 * 1024 * 1024):
    """Largest multiple-of-8 row tile whose VMEM buffer stays ~target_bytes."""
    if batch <= 8:
        return batch
    rows = max(1, target_bytes // max(1, width * dtype_bytes))
    rows = max(8, (rows // 8) * 8)
    return batch if rows >= batch else rows


def rsoftmax(x, radix, cardinality, *, block_rows=None):
    """JAX/Pallas equivalent of rSoftMax.forward.

    x: (B, C, 1, 1) NCHW (or (B, C)); C = cardinality * radix * inner.
    Returns (B, C) for radix > 1, original shape for radix == 1 (torch parity).
    """
    batch = x.shape[0]
    orig_shape = x.shape
    flat = x.reshape(batch, -1)                 # free view (H = W = 1)
    channels = flat.shape[1]
    dtype_bytes = jnp.dtype(x.dtype).itemsize

    tb = block_rows if block_rows is not None else _batch_tile(
        batch, channels, dtype_bytes)
    tb = min(tb, batch)
    grid = (pl.cdiv(batch, tb),)
    cparams = pltpu.CompilerParams(dimension_semantics=("parallel",))

    if radix > 1:
        assert channels % (radix * cardinality) == 0
        inner = channels // (radix * cardinality)
        kernel = functools.partial(
            _rsoftmax_kernel, radix=radix, cardinality=cardinality, inner=inner)
        out = pl.pallas_call(
            kernel,
            out_shape=jax.ShapeDtypeStruct((batch, channels), x.dtype),
            grid=grid,
            in_specs=[pl.BlockSpec((tb, channels), lambda b: (b, 0))],
            out_specs=pl.BlockSpec((tb, channels), lambda b: (b, 0)),
            compiler_params=cparams,
        )(flat)
        return out                              # == torch reshape(batch, -1)
    else:
        out = pl.pallas_call(
            _sigmoid_kernel,
            out_shape=jax.ShapeDtypeStruct((batch, channels), x.dtype),
            grid=grid,
            in_specs=[pl.BlockSpec((tb, channels), lambda b: (b, 0))],
            out_specs=pl.BlockSpec((tb, channels), lambda b: (b, 0)),
            compiler_params=cparams,
        )(flat)
        return out.reshape(orig_shape)          # torch keeps NCHW here


def _reference(x, radix, cardinality):
    batch = x.shape[0]
    if radix > 1:
        xr = x.reshape(batch, cardinality, radix, -1)
        xr = jnp.transpose(xr, (0, 2, 1, 3))
        xr = jax.nn.softmax(xr, axis=1)
        return xr.reshape(batch, -1)
    return jax.nn.sigmoid(x)


if __name__ == "__main__":
    key = jax.random.PRNGKey(0)
    k1, k2, k3 = jax.random.split(key, 3)

    # Case 1: radix>1 softmax path (B=2, cardinality=2, radix=2, inner=16 -> C=64)
    radix, cardinality = 2, 2
    B = 2
    C = cardinality * radix * 16
    x = jax.random.normal(k1, (B, C, 1, 1), dtype=jnp.float32)
    y = jax.block_until_ready(rsoftmax(x, radix, cardinality))
    y_ref = _reference(x, radix, cardinality)
    assert y.shape == (B, C), y.shape
    assert jnp.allclose(y, y_ref, atol=1e-5, rtol=1e-5)

    # Case 2: radix==1 sigmoid path, output keeps NCHW shape
    x1 = jax.random.normal(k2, (2, 8, 1, 1), dtype=jnp.float32)
    y1 = jax.block_until_ready(rsoftmax(x1, 1, 1))
    y1_ref = _reference(x1, 1, 1)
    assert y1.shape == x1.shape
    assert jnp.allclose(y1, y1_ref, atol=1e-5, rtol=1e-5)

    # Case 3: multi-step grid with a partial last batch tile (exercises tiling
    # + masked edge writes): B=20, cardinality=1, radix=2, inner=16 -> C=32.
    radix3, card3 = 2, 1
    B3, inner3 = 20, 16
    C3 = card3 * radix3 * inner3
    x3 = jax.random.normal(k3, (B3, C3, 1, 1), dtype=jnp.float32)
    y3 = jax.block_until_ready(rsoftmax(x3, radix3, card3, block_rows=8))
    y3_ref = _reference(x3, radix3, card3)
    assert y3.shape == (B3, C3), y3.shape
    assert jnp.allclose(y3, y3_ref, atol=1e-5, rtol=1e-5)

    print("KERNEL_OK")
</pallas_src>

<mosaic_0001>
module attributes {stable_mosaic.version = 11 : i64} {
  func.func @_rsoftmax_kernel(%arg0: i32, %arg1: memref<2x64xf32, #tpu.memory_space<vmem>>, %arg2: memref<2x64xf32, #tpu.memory_space<vmem>>) attributes {dimension_semantics = [#tpu.dimension_semantics<parallel>], iteration_bounds = array<i64: 1>, scalar_prefetch = 0 : i64, scratch_operands = 0 : i64, tpu.core_type = #tpu.core_type<tc>, window_params = [{transform_indices = @transform_0, window_bounds = array<i64: 2, 64>}, {transform_indices = @transform_1, window_bounds = array<i64: 2, 64>}]} {
    %c0 = arith.constant 0 : index
    %c0_0 = arith.constant 0 : index
    %0 = vector.load %arg1[%c0, %c0_0] : memref<2x64xf32, #tpu.memory_space<vmem>>, vector<2x64xf32>
    %1 = vector.extract_strided_slice %0 {offsets = [0, 0], sizes = [2, 16], strides = [1, 1]} : vector<2x64xf32> to vector<2x16xf32>
    %2 = vector.extract_strided_slice %0 {offsets = [0, 16], sizes = [2, 16], strides = [1, 1]} : vector<2x64xf32> to vector<2x16xf32>
    %3 = arith.maximumf %1, %2 : vector<2x16xf32>
    %4 = arith.subf %1, %3 : vector<2x16xf32>
    %5 = math.exp %4 : vector<2x16xf32>
    %6 = arith.subf %2, %3 : vector<2x16xf32>
    %7 = math.exp %6 : vector<2x16xf32>
    %8 = arith.addf %5, %7 : vector<2x16xf32>
    %9 = tpu.reciprocal %8 : vector<2x16xf32> -> vector<2x16xf32>
    %10 = arith.mulf %5, %9 : vector<2x16xf32>
    %11 = arith.mulf %7, %9 : vector<2x16xf32>
    %12 = vector.extract_strided_slice %0 {offsets = [0, 32], sizes = [2, 16], strides = [1, 1]} : vector<2x64xf32> to vector<2x16xf32>
    %13 = vector.extract_strided_slice %0 {offsets = [0, 48], sizes = [2, 16], strides = [1, 1]} : vector<2x64xf32> to vector<2x16xf32>
    %14 = arith.maximumf %12, %13 : vector<2x16xf32>
    %15 = arith.subf %12, %14 : vector<2x16xf32>
    %16 = math.exp %15 : vector<2x16xf32>
    %17 = arith.subf %13, %14 : vector<2x16xf32>
    %18 = math.exp %17 : vector<2x16xf32>
    %19 = arith.addf %16, %18 : vector<2x16xf32>
    %20 = tpu.reciprocal %19 : vector<2x16xf32> -> vector<2x16xf32>
    %21 = arith.mulf %16, %20 : vector<2x16xf32>
    %22 = arith.mulf %18, %20 : vector<2x16xf32>
    %23 = tpu.concatenate %10, %21, %11, %22 in 1 : vector<2x16xf32>, vector<2x16xf32>, vector<2x16xf32>, vector<2x16xf32> -> vector<2x64xf32>
    %c0_1 = arith.constant 0 : index
    %c0_2 = arith.constant 0 : index
    %24 = vector.load %arg2[%c0_1, %c0_2] : memref<2x64xf32, #tpu.memory_space<vmem>>, vector<2x64xf32>
    tpu.vector_store %arg2[%c0_1, %c0_2], %23 {strides = array<i32>} : memref<2x64xf32, #tpu.memory_space<vmem>>, vector<2x64xf32>,
    return
  }
  func.func @transform_0(%arg0: i32) -> (i32, i32) {
    %c0_i32 = arith.constant 0 : i32
    %c0_i32_0 = arith.constant 0 : i32
    return %arg0, %c0_i32 : i32, i32
  }
  func.func @transform_1(%arg0: i32) -> (i32, i32) {
    %c0_i32 = arith.constant 0 : i32
    %c0_i32_0 = arith.constant 0 : i32
    return %arg0, %c0_i32 : i32, i32
  }
}

</mosaic_0001>

<llo_original>
// kernel: tpu_custom_call.1
$region0: #{tpu_custom_call.1}
  #allocation0 [shape = 'u32[]', space=smem, size = 0x4, offset = 0x4, fixed_abs, tag = 'smem constant byte address 0x4 - core index']
  #allocation1 [shape = 'u32[144,128]{1,0:T(1,128)}', space=vmem, size = 0x12000, scoped, tag = 'internal scratch']
  %s0 = inlined_call_operand.hbm [shape: f32[2,64], index: 0, kind: input, shape index: {}]
  %s1 = inlined_call_operand.hbm [shape: f32[2,64], index: 1, kind: output, shape index: {}]
  %s2 = sld [smem:[#allocation0]]
  $region18: #{tpu_custom_call.1} parent=0
    _
  %s4 = ssub.s32 1, %s2
  %s5 = scalar_select 0, %s4, %s2
  $region1: #{tpu_custom_call.1} parent=0
    #allocation2 [shape = 'u8[1024]{0}', space=vmem, size = 0x400, scoped, tag = 'input window, operand 0, single buffered']
    #allocation3 [shape = 's32[1]{0}', space=sflag, size = 0x4, scoped, tag = 'scoped memory for tpu_custom_call.1']
    #allocation4 [shape = 's32[1]{0}', space=sflag, size = 0x4, scoped, tag = 'scoped memory for tpu_custom_call.1']
    #allocation5 [shape = 'u8[1024]{0}', space=vmem, size = 0x400, scoped, tag = 'output window, operand 0, single buffered']
    %6 = vsyncpa [#allocation3], 0
    %7 = vsyncpa [#allocation4], 0
    // Predicated region
    $region2: #{tpu_custom_call.1} parent=1 // pred_check
      _
    $region3: #{tpu_custom_call.1} parent=1 // pred_check_branch
      %9 = sbr.rel (0) target = $region5
    $region4: #{tpu_custom_call.1} parent=1 // pred_region
      %s11 = ssub.s32 32, 32
      %12 = vsyncadd [#allocation3], %s11
      %s14 = sshll.u32 [#allocation2], 4
      %s15 = int_to_ptr.vmem [resolvable:$true] %s14
      %17 = dma.hbm_to_vmem [thread:$0]  %s0, 32, %s15, [#allocation3]
    $region5: #{tpu_custom_call.1} parent=1 // pred_fallthru
      _
    // Predicated region
    $region6: #{tpu_custom_call.1} parent=1 // pred_check
      _
    $region7: #{tpu_custom_call.1} parent=1 // pred_check_branch
      %19 = sbr.rel (0) target = $region9
    $region8: #{tpu_custom_call.1} parent=1 // pred_region
      %20 = dma.done [#allocation3], 32
    $region9: #{tpu_custom_call.1} parent=1 // pred_fallthru
      _
    %v21 = vld [vmem:[#allocation2] sm:$0x3]
    %23 = vrot.lane.b32.xlu0 %v21, 112
    %v24 = vpop.permute.xlu0 %23
    %v26 = vmax.f32 %v21, %v24
    %v27 = vsub.f32 %v21, %v26
    %v28 = vmul.f32 %v27, 1.442695
    %v29 = vpow.pop %v28
    %31 = vrot.lane.b32.xlu0 %v26, 16
    %v32 = vpop.permute.xlu0 %31
    %v34 = vsub.f32 %v21, %v32
    %v35 = vmul.f32 %v34, 1.442695
    %v36 = vpow.pop %v35
    %38 = vrot.lane.b32.xlu0 %v36, 112
    %v39 = vpop.permute.xlu0 %38
    %v41 = vadd.f32 %v29, %v39
    %v42 = vrcp.pop %v41
    %v43 = vmul.f32 %v29, %v42
    %45 = vrot.lane.b32.xlu0 %v42, 16
    %v46 = vpop.permute.xlu0 %45
    %v48 = vmul.f32 %v36, %v46
    %50 = vrot.lane.b32.xlu0 %v43, 112
    %v51 = vpop.permute.xlu0 %50
    %54 = vrot.lane.b32.xlu0 %v48, 16
    %v55 = vpop.permute.xlu0 %54
    %vm57 = vcmask 130048
    %v58 = vsel %vm57, %v43, %v51
    %vm59 = vcmask 261120
    %v60 = vsel %vm59, %v58, %v55
    %vm61 = vcmask 392192
    %v62 = vsel %vm61, %v60, %v48
    %vm63 = vcmask 517120
    %64 = vst.msk [vmem:[#allocation5] sm:$0x3] %vm63, %v62
    // Predicated region
    $region10: #{tpu_custom_call.1} parent=1 // pred_check
      _
    $region11: #{tpu_custom_call.1} parent=1 // pred_check_branch
      %66 = sbr.rel (0) target = $region13
    $region12: #{tpu_custom_call.1} parent=1 // pred_region
      %s68 = ssub.s32 32, 32
      %69 = vsyncadd [#allocation4], %s68
      %s71 = sshll.u32 [#allocation5], 4
      %s72 = int_to_ptr.vmem [resolvable:$true] %s71
      %74 = dma.vmem_to_hbm [thread:$0]  %s72, 32, %s1, [#allocation4]
    $region13: #{tpu_custom_call.1} parent=1 // pred_fallthru
      _
    // Predicated region
    $region14: #{tpu_custom_call.1} parent=1 // pred_check
      _
    $region15: #{tpu_custom_call.1} parent=1 // pred_check_branch
      %76 = sbr.rel (0) target = $region17
    $region16: #{tpu_custom_call.1} parent=1 // pred_region
      %77 = dma.done [#allocation4], 32
    $region17: #{tpu_custom_call.1} parent=1 // pred_fallthru
      _
    %78 = vsyncpa [#allocation3], 1
    %79 = vsyncpa [#allocation4], 1

</llo_original>
